<compile_context>
chip_gen: v7x
topology: tpu7x:2x2x1
jax: 0.10.0
libtpu: 0.0.40
codegen_flags: <defaults>
</compile_context>

<pallas_src>
import numpy as np
import jax
import jax.numpy as jnp
from jax.experimental import pallas as pl
from jax.experimental.pallas import tpu as pltpu

BN_EPS = 1e-4  # nn.BatchNorm2d(..., eps=0.0001, affine=False), training-mode stats


def models_diff_forward(feat_0, feat_1, w_s_0, w_f_0, w_s_1, w_f_1,
                        goods_0, goods_1, *, tile_p=None):
    """feat_m: (N, C, H, W) extracted feature maps of model_m.
    w_s_m: (K_m, 1, H*W, 1), w_f_m: (1, K_m, 1, C), goods_m: (Kg,) int indices.
    Returns (N, Kg, 1, 1) = response_1[:, goods_1] - response_0[:, goods_0]."""
    N, C, H, W = feat_0.shape
    assert feat_1.shape == feat_0.shape, "chronically matched models share mod_shape"
    P = H * W
    NC = N * C
    Kg = int(goods_0.shape[0])
    assert int(goods_1.shape[0]) == Kg

    # Lane-dense axes: pad selected-neuron axis and spatial axis to x128.
    Kpad = max(128, ((Kg + 127) // 128) * 128)
    Ppad = ((P + 127) // 128) * 128

    # --- explicit VMEM budgeting (safe on v7x's 64 MiB/TC, fine on v5e/v6e) ---
    def vmem_need(tp):
        feat_blk = 2 * NC * tp * 2            # bf16 feat tile, double-buffered
        ws_blk = 2 * tp * Kpad * 2            # bf16 ws tile, double-buffered
        wfr_blk = 2 * NC * Kpad * 2           # bf16 wfr, (default) double-buffered
        sel_blk = 2 * (C * NC + NC * C) * 4   # S and S^T, f32
        r_blk = 2 * N * NC * 4                # R, f32
        out_blk = 2 * N * Kpad * 4
        scratch = 4 * NC * 4 + NC * Kpad * 4  # ssum/ssq/mean/rstd + s_acc
        return feat_blk + ws_blk + wfr_blk + sel_blk + r_blk + out_blk + scratch

    if tile_p is None:
        budget = 40 * 1024 * 1024
        cands = [t for t in (1024, 512, 256, 128) if Ppad % t == 0] or [Ppad]
        tile_p = next((t for t in cands if vmem_need(t) <= budget), cands[-1])
    assert Ppad % tile_p == 0, "padded P must be divisible by tile_p"
    n_pt = Ppad // tile_p

    def prep(feat, w_s, w_f, goods):
        # dense 2D slab, rows ordered n-major: row = n*C + c ; bf16 to halve HBM
        feat2 = jnp.zeros((NC, Ppad), jnp.bfloat16).at[:, :P].set(
            feat.reshape(NC, P).astype(jnp.bfloat16))
        # gather the chronically-good neurons' weights (== the [:, goods] indexing)
        ws = jnp.abs(w_s.reshape(w_s.shape[0], P))[goods]                    # (Kg, P)
        ws_t = jnp.zeros((Ppad, Kpad), jnp.bfloat16).at[:P, :Kg].set(
            ws.T.astype(jnp.bfloat16))                                       # (Ppad, Kpad)
        wf = w_f.reshape(w_f.shape[1], C)[goods]                             # (Kg, C)
        wf_t = jnp.zeros((C, Kpad), jnp.float32).at[:, :Kg].set(
            wf.T.astype(jnp.float32))                                        # (C, Kpad)
        wf_rows = jnp.tile(wf_t, (N, 1)).astype(jnp.bfloat16)                # (NC, Kpad)
        return feat2, ws_t, wf_rows

    f0, ws0, wfr0 = prep(feat_0, w_s_0, w_f_0, goods_0)
    f1, ws1, wfr1 = prep(feat_1, w_s_1, w_f_1, goods_1)
    feat = jnp.stack([f0, f1])     # (2, NC, Ppad)  bf16
    ws = jnp.stack([ws0, ws1])     # (2, Ppad, Kpad) bf16
    wfr = jnp.stack([wfr0, wfr1])  # (2, NC, Kpad)  bf16

    # Factored same-channel combine (replaces the O(NC^2) G matrix):
    #   S  (C, NC): S[c, row]  = 1 iff row % C == c   -> per-channel reduce
    #   ST (NC, C): ST[row, c] = 1 iff row % C == c   -> broadcast back to rows
    c_of_row = np.arange(NC) % C
    S = jnp.asarray((np.arange(C)[:, None] == c_of_row[None, :]).astype(np.float32))
    ST = jnp.asarray((c_of_row[:, None] == np.arange(C)[None, :]).astype(np.float32))
    # R (N, NC): R[n, row] = 1 iff row belongs to sample n (channel-sum epilogue)
    n_of_row = np.arange(NC) // C
    R = jnp.asarray((n_of_row[None, :] == np.arange(N)[:, None]).astype(np.float32))

    # BN count per channel (biased variance); zero-padded columns contribute 0.
    inv_count = 1.0 / float(N * P)

    def kernel(feat_ref, ws_ref, wfr_ref, sel_ref, selT_ref, r_ref, out_ref,
               ssum, ssq, mean_r, rstd_r, s_acc):
        ph = pl.program_id(1)    # 0: BN stats pass, 1: normalize + matmul pass
        pt = pl.program_id(2)    # P-tile
        npt = pl.num_programs(2)

        xf = feat_ref[...].astype(jnp.float32)      # (NC, tile_p)

        @pl.when(ph == 0)
        def _stats():
            @pl.when(pt == 0)
            def _init():
                ssum[...] = jnp.zeros_like(ssum)
                ssq[...] = jnp.zeros_like(ssq)

            # one-pass stats (feat is ~zero-mean CNN activations, so the
            # E[x^2]-mean^2 form is well conditioned; use a shifted/two-pass
            # variant if features ever carry a large DC offset).
            ssum[...] = ssum[...] + jnp.sum(xf, axis=1, keepdims=True)
            ssq[...] = ssq[...] + jnp.sum(xf * xf, axis=1, keepdims=True)

            @pl.when(pt == npt - 1)
            def _finalize():
                # per-channel stats via a (C,NC) 0/1 reduce, then broadcast
                # back to rows with its transpose -- O(NC*C), all on the MXU.
                chan_sum = jnp.dot(sel_ref[...], ssum[...],
                                   preferred_element_type=jnp.float32)   # (C, 1)
                chan_sq = jnp.dot(sel_ref[...], ssq[...],
                                  preferred_element_type=jnp.float32)    # (C, 1)
                mean_c = chan_sum * inv_count
                var_c = chan_sq * inv_count - mean_c * mean_c
                rstd_c = jax.lax.rsqrt(var_c + BN_EPS)
                mean_r[...] = jnp.dot(selT_ref[...], mean_c,
                                      preferred_element_type=jnp.float32)  # (NC,1)
                rstd_r[...] = jnp.dot(selT_ref[...], rstd_c,
                                      preferred_element_type=jnp.float32)  # (NC,1)

        @pl.when(ph == 1)
        def _compute():
            @pl.when(pt == 0)
            def _zero():
                s_acc[...] = jnp.zeros_like(s_acc)

            # centered ReLU only; rstd (>= 0, per-row) commutes with ReLU and
            # is folded into the once-per-model epilogue below.
            y = jnp.maximum(xf - mean_r[...], 0.0)                      # (NC, tile_p)
            s_acc[...] = s_acc[...] + jnp.dot(
                y.astype(jnp.bfloat16), ws_ref[...],
                preferred_element_type=jnp.float32)                     # (NC, Kpad)

            @pl.when(pt == npt - 1)
            def _epilogue():
                # * rstd * w_f, then sum over channels of each sample via a
                # tiny 0/1 matmul -> (N, Kpad); single lane-dense writeback.
                scaled = s_acc[...] * (rstd_r[...] * wfr_ref[...].astype(jnp.float32))
                out_ref[...] = jnp.dot(r_ref[...], scaled,
                                       preferred_element_type=jnp.float32)

        del out_ref  # (written only in the phase-1 epilogue above)

    need = vmem_need(tile_p)
    vmem_limit = int(min(max(need * 2, 32 * 1024 * 1024), 56 * 1024 * 1024))

    out2 = pl.pallas_call(
        kernel,
        # one (N, Kpad) block per model; diff is done in the wrapper so the
        # model axis is fully independent (v7x: split across the two TCs).
        out_shape=jax.ShapeDtypeStruct((2, N, Kpad), jnp.float32),
        grid=(2, 2, n_pt),
        in_specs=[
            # feat: streamed per P-tile in both phases (bf16)
            pl.BlockSpec((None, NC, tile_p), lambda m, ph, pt: (m, 0, pt)),
            # ws: only advances during phase 1 (ph*pt == 0 during the stats pass)
            pl.BlockSpec((None, tile_p, Kpad), lambda m, ph, pt: (m, ph * pt, 0)),
            pl.BlockSpec((None, NC, Kpad), lambda m, ph, pt: (m, 0, 0)),
            pl.BlockSpec((C, NC), lambda m, ph, pt: (0, 0)),
            pl.BlockSpec((NC, C), lambda m, ph, pt: (0, 0)),
            pl.BlockSpec((N, NC), lambda m, ph, pt: (0, 0)),
        ],
        out_specs=pl.BlockSpec((None, N, Kpad), lambda m, ph, pt: (m, 0, 0)),
        scratch_shapes=[
            pltpu.VMEM((NC, 1), jnp.float32),    # running sum per (n, c) row
            pltpu.VMEM((NC, 1), jnp.float32),    # running sum of squares
            pltpu.VMEM((NC, 1), jnp.float32),    # per-row (== per-channel) mean
            pltpu.VMEM((NC, 1), jnp.float32),    # per-row rstd
            pltpu.VMEM((NC, Kpad), jnp.float32),  # deferred-epilogue accumulator
        ],
        compiler_params=pltpu.CompilerParams(
            # model axis is independent -> parallel (2 TCs on v7x);
            # phase / P-tile accumulate into shared scratch -> arbitrary.
            dimension_semantics=("parallel", "arbitrary", "arbitrary"),
            vmem_limit_bytes=vmem_limit,
        ),
    )(feat, ws, wfr, S, ST, R)

    out = out2[1] - out2[0]                      # model_1 - model_0
    # drop K padding; PyTorch returns (N, n_good_neurons, 1, 1)
    return out[:, :Kg].reshape(N, Kg, 1, 1)


def reference_models_diff(feat_0, feat_1, w_s_0, w_f_0, w_s_1, w_f_1,
                          goods_0, goods_1, matmul_dtype=jnp.float32,
                          feat_dtype=jnp.float32):
    """Pure-JAX reference of the PyTorch forward (post feature extraction)."""
    def resp(feat, w_s, w_f):
        n, c, h, w = feat.shape
        p = h * w
        feat = feat.astype(feat_dtype).astype(jnp.float32)
        mean = jnp.mean(feat, axis=(0, 2, 3), keepdims=True)
        var = jnp.mean((feat - mean) ** 2, axis=(0, 2, 3), keepdims=True)
        y = jax.nn.relu((feat - mean) / jnp.sqrt(var + BN_EPS)).reshape(n, c, p)
        ws = jnp.abs(w_s.reshape(w_s.shape[0], p))                    # (K, P)
        s = jnp.einsum("ncp,kp->nck",
                       y.astype(matmul_dtype), ws.astype(matmul_dtype),
                       preferred_element_type=jnp.float32)            # (N, C, K)
        wf = w_f.reshape(w_f.shape[1], c)                             # (K, C)
        return jnp.sum(s * wf.T[None], axis=1)                        # (N, K)

    r0 = resp(feat_0, w_s_0, w_f_0)[:, goods_0]
    r1 = resp(feat_1, w_s_1, w_f_1)[:, goods_1]
    out = r1 - r0
    return out.reshape(out.shape[0], out.shape[1], 1, 1)


def _max_rel_err(a, b):
    return float(jnp.max(jnp.abs(a - b)) / (jnp.max(jnp.abs(b)) + 1e-6))


if __name__ == "__main__":
    # Small shapes consistent with the module: mod_shape = (1, C, H, W), two
    # matched models with K0 / K1 neurons, chronic_goods picks Kg from each.
    N, C, H, W = 2, 4, 16, 16
    K0, K1 = 10, 12
    goods_0 = jnp.array([0, 2, 3, 5, 7, 9], dtype=jnp.int32)
    goods_1 = jnp.array([1, 2, 4, 6, 8, 11], dtype=jnp.int32)

    key = jax.random.PRNGKey(0)
    k1, k2, k3, k4, k5, k6 = jax.random.split(key, 6)

    # TODO(synk): the two pretrained backbones + FeatureExtractor hooks are
    # external; we feed the kernel their extracted feature maps directly.
    feat_0 = jax.random.normal(k1, (N, C, H, W), dtype=jnp.float32)
    feat_1 = jax.random.normal(k2, (N, C, H, W), dtype=jnp.float32)
    w_s_0 = jax.random.normal(k3, (K0, 1, H * W, 1), dtype=jnp.float32)
    w_f_0 = jax.random.normal(k4, (1, K0, 1, C), dtype=jnp.float32)
    w_s_1 = jax.random.normal(k5, (K1, 1, H * W, 1), dtype=jnp.float32)
    w_f_1 = jax.random.normal(k6, (1, K1, 1, C), dtype=jnp.float32)

    # tile_p=128 forces a 2-tile P stream at these toy shapes (exercises the
    # two-phase / deferred-epilogue accumulation path; auto-select would pick 256).
    out = models_diff_forward(feat_0, feat_1, w_s_0, w_f_0, w_s_1, w_f_1,
                              goods_0, goods_1, tile_p=128)
    out = jax.block_until_ready(out)
    assert out.shape == (N, int(goods_0.shape[0]), 1, 1), out.shape

    # numerics-matched reference (bf16 feat + bf16 MXU operands, f32 accumulation)
    ref_bf16 = reference_models_diff(feat_0, feat_1, w_s_0, w_f_0, w_s_1, w_f_1,
                                     goods_0, goods_1,
                                     matmul_dtype=jnp.bfloat16,
                                     feat_dtype=jnp.bfloat16)
    err_bf16 = _max_rel_err(out, ref_bf16)
    assert err_bf16 < 2e-2, f"max rel err vs bf16-matched ref: {err_bf16}"

    # loose sanity check vs full-f32 reference (bf16 operand rounding dominates)
    ref_f32 = reference_models_diff(feat_0, feat_1, w_s_0, w_f_0, w_s_1, w_f_1,
                                    goods_0, goods_1, matmul_dtype=jnp.float32,
                                    feat_dtype=jnp.float32)
    err_f32 = _max_rel_err(out, ref_f32)
    assert err_f32 < 6e-2, f"max rel err vs f32 ref: {err_f32}"

    print("KERNEL_OK")
</pallas_src>

<mosaic_0001>
module attributes {stable_mosaic.version = 11 : i64} {
  func.func @kernel(%arg0: i32, %arg1: i32, %arg2: i32, %arg3: memref<1x8x128xbf16, #tpu.memory_space<vmem>>, %arg4: memref<1x128x128xbf16, #tpu.memory_space<vmem>>, %arg5: memref<1x8x128xbf16, #tpu.memory_space<vmem>>, %arg6: memref<4x8xf32, #tpu.memory_space<vmem>>, %arg7: memref<8x4xf32, #tpu.memory_space<vmem>>, %arg8: memref<2x8xf32, #tpu.memory_space<vmem>>, %arg9: memref<1x2x128xf32, #tpu.memory_space<vmem>>, %arg10: memref<8x1xf32, #tpu.memory_space<vmem>>, %arg11: memref<8x1xf32, #tpu.memory_space<vmem>>, %arg12: memref<8x1xf32, #tpu.memory_space<vmem>>, %arg13: memref<8x1xf32, #tpu.memory_space<vmem>>, %arg14: memref<8x128xf32, #tpu.memory_space<vmem>>) attributes {dimension_semantics = [#tpu.dimension_semantics<parallel>, #tpu.dimension_semantics<arbitrary>, #tpu.dimension_semantics<arbitrary>], iteration_bounds = array<i64: 2, 2, 2>, scalar_prefetch = 0 : i64, scratch_operands = 5 : i64, tpu.core_type = #tpu.core_type<tc>, window_params = [{transform_indices = @transform_0, window_bounds = array<i64: 1, 8, 128>}, {transform_indices = @transform_1, window_bounds = array<i64: 1, 128, 128>}, {transform_indices = @transform_2, window_bounds = array<i64: 1, 8, 128>}, {pipeline_mode = #tpu.pipeline_mode<synchronous>, transform_indices = @transform_3, window_bounds = array<i64: 4, 8>}, {pipeline_mode = #tpu.pipeline_mode<synchronous>, transform_indices = @transform_4, window_bounds = array<i64: 8, 4>}, {pipeline_mode = #tpu.pipeline_mode<synchronous>, transform_indices = @transform_5, window_bounds = array<i64: 2, 8>}, {transform_indices = @transform_6, window_bounds = array<i64: 1, 2, 128>}]} {
    %c0 = arith.constant 0 : index
    %c0_0 = arith.constant 0 : index
    %c0_1 = arith.constant 0 : index
    %0 = vector.load %arg3[%c0, %c0_0, %c0_1] : memref<1x8x128xbf16, #tpu.memory_space<vmem>>, vector<1x8x128xbf16>
    %1 = vector.shape_cast %0 : vector<1x8x128xbf16> to vector<8x128xbf16>
    %2 = arith.extf %1 : vector<8x128xbf16> to vector<8x128xf32>
    %c0_i32 = arith.constant 0 : i32
    %3 = arith.cmpi eq, %arg1, %c0_i32 : i32
    %4 = arith.extui %3 : i1 to i32
    %c0_i32_2 = arith.constant 0 : i32
    %5 = arith.cmpi ne, %4, %c0_i32_2 : i32
    scf.if %5 {
      %c0_i32_4 = arith.constant 0 : i32
      %9 = arith.cmpi eq, %arg2, %c0_i32_4 : i32
      %10 = arith.extui %9 : i1 to i32
      %c0_i32_5 = arith.constant 0 : i32
      %11 = arith.cmpi ne, %10, %c0_i32_5 : i32
      scf.if %11 {
        %cst_17 = arith.constant 0.000000e+00 : f32
        %26 = vector.broadcast %cst_17 : f32 to vector<8x1xf32>
        %c0_18 = arith.constant 0 : index
        %c0_19 = arith.constant 0 : index
        %27 = vector.load %arg10[%c0_18, %c0_19] : memref<8x1xf32, #tpu.memory_space<vmem>>, vector<8x1xf32>
        tpu.vector_store %arg10[%c0_18, %c0_19], %26 {strides = array<i32>} : memref<8x1xf32, #tpu.memory_space<vmem>>, vector<8x1xf32>,
        %cst_20 = arith.constant 0.000000e+00 : f32
        %28 = vector.broadcast %cst_20 : f32 to vector<8x1xf32>
        %c0_21 = arith.constant 0 : index
        %c0_22 = arith.constant 0 : index
        %29 = vector.load %arg11[%c0_21, %c0_22] : memref<8x1xf32, #tpu.memory_space<vmem>>, vector<8x1xf32>
        tpu.vector_store %arg11[%c0_21, %c0_22], %28 {strides = array<i32>} : memref<8x1xf32, #tpu.memory_space<vmem>>, vector<8x1xf32>,
      } else {
      }
      %c0_6 = arith.constant 0 : index
      %c0_7 = arith.constant 0 : index
      %12 = vector.load %arg10[%c0_6, %c0_7] : memref<8x1xf32, #tpu.memory_space<vmem>>, vector<8x1xf32>
      %cst = arith.constant dense<0.000000e+00> : vector<8xf32>
      %13 = vector.multi_reduction <add>, %2, %cst [1] : vector<8x128xf32> to vector<8xf32>
      %14 = vector.shape_cast %13 : vector<8xf32> to vector<8x1xf32>
      %15 = arith.addf %12, %14 : vector<8x1xf32>
      %c0_8 = arith.constant 0 : index
      %c0_9 = arith.constant 0 : index
      %16 = vector.load %arg10[%c0_8, %c0_9] : memref<8x1xf32, #tpu.memory_space<vmem>>, vector<8x1xf32>
      tpu.vector_store %arg10[%c0_8, %c0_9], %15 {strides = array<i32>} : memref<8x1xf32, #tpu.memory_space<vmem>>, vector<8x1xf32>,
      %c0_10 = arith.constant 0 : index
      %c0_11 = arith.constant 0 : index
      %17 = vector.load %arg11[%c0_10, %c0_11] : memref<8x1xf32, #tpu.memory_space<vmem>>, vector<8x1xf32>
      %18 = arith.mulf %2, %2 : vector<8x128xf32>
      %cst_12 = arith.constant dense<0.000000e+00> : vector<8xf32>
      %19 = vector.multi_reduction <add>, %18, %cst_12 [1] : vector<8x128xf32> to vector<8xf32>
      %20 = vector.shape_cast %19 : vector<8xf32> to vector<8x1xf32>
      %21 = arith.addf %17, %20 : vector<8x1xf32>
      %c0_13 = arith.constant 0 : index
      %c0_14 = arith.constant 0 : index
      %22 = vector.load %arg11[%c0_13, %c0_14] : memref<8x1xf32, #tpu.memory_space<vmem>>, vector<8x1xf32>
      tpu.vector_store %arg11[%c0_13, %c0_14], %21 {strides = array<i32>} : memref<8x1xf32, #tpu.memory_space<vmem>>, vector<8x1xf32>,
      %c1_i32_15 = arith.constant 1 : i32
      %23 = arith.cmpi eq, %arg2, %c1_i32_15 : i32
      %24 = arith.extui %23 : i1 to i32
      %c0_i32_16 = arith.constant 0 : i32
      %25 = arith.cmpi ne, %24, %c0_i32_16 : i32
      scf.if %25 {
        %c0_17 = arith.constant 0 : index
        %c0_18 = arith.constant 0 : index
        %26 = vector.load %arg6[%c0_17, %c0_18] : memref<4x8xf32, #tpu.memory_space<vmem>>, vector<4x8xf32>
        %c0_19 = arith.constant 0 : index
        %c0_20 = arith.constant 0 : index
        %27 = vector.load %arg10[%c0_19, %c0_20] : memref<8x1xf32, #tpu.memory_space<vmem>>, vector<8x1xf32>
        %cst_21 = arith.constant dense<0.000000e+00> : vector<4x1xf32>
        %28 = tpu.matmul %26, %27, %cst_21 {dimension_numbers = #tpu.dot_dimension_numbers<[1], [0], [0], [1], [0, 0, 1, 1], [], []>} : vector<4x8xf32>, vector<8x1xf32>, vector<4x1xf32> -> vector<4x1xf32>
        %c0_22 = arith.constant 0 : index
        %c0_23 = arith.constant 0 : index
        %29 = vector.load %arg6[%c0_22, %c0_23] : memref<4x8xf32, #tpu.memory_space<vmem>>, vector<4x8xf32>
        %c0_24 = arith.constant 0 : index
        %c0_25 = arith.constant 0 : index
        %30 = vector.load %arg11[%c0_24, %c0_25] : memref<8x1xf32, #tpu.memory_space<vmem>>, vector<8x1xf32>
        %cst_26 = arith.constant dense<0.000000e+00> : vector<4x1xf32>
        %31 = tpu.matmul %29, %30, %cst_26 {dimension_numbers = #tpu.dot_dimension_numbers<[1], [0], [0], [1], [0, 0, 1, 1], [], []>} : vector<4x8xf32>, vector<8x1xf32>, vector<4x1xf32> -> vector<4x1xf32>
        %cst_27 = arith.constant 0.001953125 : f32
        %32 = vector.broadcast %cst_27 : f32 to vector<4x1xf32>
        %33 = arith.mulf %28, %32 : vector<4x1xf32>
        %cst_28 = arith.constant 0.001953125 : f32
        %34 = vector.broadcast %cst_28 : f32 to vector<4x1xf32>
        %35 = arith.mulf %31, %34 : vector<4x1xf32>
        %36 = arith.mulf %33, %33 : vector<4x1xf32>
        %37 = arith.subf %35, %36 : vector<4x1xf32>
        %cst_29 = arith.constant 9.99999974E-5 : f32
        %38 = vector.broadcast %cst_29 : f32 to vector<4x1xf32>
        %39 = arith.addf %37, %38 : vector<4x1xf32>
        %40 = math.rsqrt %39 : vector<4x1xf32>
        %c0_30 = arith.constant 0 : index
        %c0_31 = arith.constant 0 : index
        %41 = vector.load %arg7[%c0_30, %c0_31] : memref<8x4xf32, #tpu.memory_space<vmem>>, vector<8x4xf32>
        %cst_32 = arith.constant dense<0.000000e+00> : vector<8x1xf32>
        %42 = tpu.matmul %41, %33, %cst_32 {dimension_numbers = #tpu.dot_dimension_numbers<[1], [0], [0], [1], [0, 0, 1, 1], [], []>} : vector<8x4xf32>, vector<4x1xf32>, vector<8x1xf32> -> vector<8x1xf32>
        %c0_33 = arith.constant 0 : index
        %c0_34 = arith.constant 0 : index
        %43 = vector.load %arg12[%c0_33, %c0_34] : memref<8x1xf32, #tpu.memory_space<vmem>>, vector<8x1xf32>
        tpu.vector_store %arg12[%c0_33, %c0_34], %42 {strides = array<i32>} : memref<8x1xf32, #tpu.memory_space<vmem>>, vector<8x1xf32>,
        %c0_35 = arith.constant 0 : index
        %c0_36 = arith.constant 0 : index
        %44 = vector.load %arg7[%c0_35, %c0_36] : memref<8x4xf32, #tpu.memory_space<vmem>>, vector<8x4xf32>
        %cst_37 = arith.constant dense<0.000000e+00> : vector<8x1xf32>
        %45 = tpu.matmul %44, %40, %cst_37 {dimension_numbers = #tpu.dot_dimension_numbers<[1], [0], [0], [1], [0, 0, 1, 1], [], []>} : vector<8x4xf32>, vector<4x1xf32>, vector<8x1xf32> -> vector<8x1xf32>
        %c0_38 = arith.constant 0 : index
        %c0_39 = arith.constant 0 : index
        %46 = vector.load %arg13[%c0_38, %c0_39] : memref<8x1xf32, #tpu.memory_space<vmem>>, vector<8x1xf32>
        tpu.vector_store %arg13[%c0_38, %c0_39], %45 {strides = array<i32>} : memref<8x1xf32, #tpu.memory_space<vmem>>, vector<8x1xf32>,
      } else {
      }
    } else {
    }
    %c1_i32 = arith.constant 1 : i32
    %6 = arith.cmpi eq, %arg1, %c1_i32 : i32
    %7 = arith.extui %6 : i1 to i32
    %c0_i32_3 = arith.constant 0 : i32
    %8 = arith.cmpi ne, %7, %c0_i32_3 : i32
    scf.if %8 {
      %c0_i32_4 = arith.constant 0 : i32
      %9 = arith.cmpi eq, %arg2, %c0_i32_4 : i32
      %10 = arith.extui %9 : i1 to i32
      %c0_i32_5 = arith.constant 0 : i32
      %11 = arith.cmpi ne, %10, %c0_i32_5 : i32
      scf.if %11 {
        %cst_18 = arith.constant 0.000000e+00 : f32
        %27 = vector.broadcast %cst_18 : f32 to vector<8x128xf32>
        %c0_19 = arith.constant 0 : index
        %c0_20 = arith.constant 0 : index
        %28 = vector.load %arg14[%c0_19, %c0_20] : memref<8x128xf32, #tpu.memory_space<vmem>>, vector<8x128xf32>
        tpu.vector_store %arg14[%c0_19, %c0_20], %27 {strides = array<i32>} : memref<8x128xf32, #tpu.memory_space<vmem>>, vector<8x128xf32>,
      } else {
      }
      %c0_6 = arith.constant 0 : index
      %c0_7 = arith.constant 0 : index
      %12 = vector.load %arg12[%c0_6, %c0_7] : memref<8x1xf32, #tpu.memory_space<vmem>>, vector<8x1xf32>
      %13 = vector.broadcast %12 : vector<8x1xf32> to vector<8x128xf32>
      %14 = arith.subf %2, %13 : vector<8x128xf32>
      %cst = arith.constant 0.000000e+00 : f32
      %15 = vector.broadcast %cst : f32 to vector<8x128xf32>
      %16 = arith.maximumf %14, %15 : vector<8x128xf32>
      %c0_8 = arith.constant 0 : index
      %c0_9 = arith.constant 0 : index
      %17 = vector.load %arg14[%c0_8, %c0_9] : memref<8x128xf32, #tpu.memory_space<vmem>>, vector<8x128xf32>
      %18 = arith.truncf %16 : vector<8x128xf32> to vector<8x128xbf16>
      %c0_10 = arith.constant 0 : index
      %c0_11 = arith.constant 0 : index
      %c0_12 = arith.constant 0 : index
      %19 = vector.load %arg4[%c0_10, %c0_11, %c0_12] : memref<1x128x128xbf16, #tpu.memory_space<vmem>>, vector<1x128x128xbf16>
      %20 = vector.shape_cast %19 : vector<1x128x128xbf16> to vector<128x128xbf16>
      %cst_13 = arith.constant dense<0.000000e+00> : vector<8x128xf32>
      %21 = tpu.matmul %18, %20, %cst_13 {dimension_numbers = #tpu.dot_dimension_numbers<[1], [0], [0], [1], [0, 0, 1, 1], [], []>} : vector<8x128xbf16>, vector<128x128xbf16>, vector<8x128xf32> -> vector<8x128xf32>
      %22 = arith.addf %17, %21 : vector<8x128xf32>
      %c0_14 = arith.constant 0 : index
      %c0_15 = arith.constant 0 : index
      %23 = vector.load %arg14[%c0_14, %c0_15] : memref<8x128xf32, #tpu.memory_space<vmem>>, vector<8x128xf32>
      tpu.vector_store %arg14[%c0_14, %c0_15], %22 {strides = array<i32>} : memref<8x128xf32, #tpu.memory_space<vmem>>, vector<8x128xf32>,
      %c1_i32_16 = arith.constant 1 : i32
      %24 = arith.cmpi eq, %arg2, %c1_i32_16 : i32
      %25 = arith.extui %24 : i1 to i32
      %c0_i32_17 = arith.constant 0 : i32
      %26 = arith.cmpi ne, %25, %c0_i32_17 : i32
      scf.if %26 {
        %c0_18 = arith.constant 0 : index
        %c0_19 = arith.constant 0 : index
        %27 = vector.load %arg14[%c0_18, %c0_19] : memref<8x128xf32, #tpu.memory_space<vmem>>, vector<8x128xf32>
        %c0_20 = arith.constant 0 : index
        %c0_21 = arith.constant 0 : index
        %28 = vector.load %arg13[%c0_20, %c0_21] : memref<8x1xf32, #tpu.memory_space<vmem>>, vector<8x1xf32>
        %c0_22 = arith.constant 0 : index
        %c0_23 = arith.constant 0 : index
        %c0_24 = arith.constant 0 : index
        %29 = vector.load %arg5[%c0_22, %c0_23, %c0_24] : memref<1x8x128xbf16, #tpu.memory_space<vmem>>, vector<1x8x128xbf16>
        %30 = vector.shape_cast %29 : vector<1x8x128xbf16> to vector<8x128xbf16>
        %31 = arith.extf %30 : vector<8x128xbf16> to vector<8x128xf32>
        %32 = vector.broadcast %28 : vector<8x1xf32> to vector<8x128xf32>
        %33 = arith.mulf %32, %31 : vector<8x128xf32>
        %34 = arith.mulf %27, %33 : vector<8x128xf32>
        %c0_25 = arith.constant 0 : index
        %c0_26 = arith.constant 0 : index
        %35 = vector.load %arg8[%c0_25, %c0_26] : memref<2x8xf32, #tpu.memory_space<vmem>>, vector<2x8xf32>
        %cst_27 = arith.constant dense<0.000000e+00> : vector<2x128xf32>
        %36 = tpu.matmul %35, %34, %cst_27 {dimension_numbers = #tpu.dot_dimension_numbers<[1], [0], [0], [1], [0, 0, 1, 1], [], []>} : vector<2x8xf32>, vector<8x128xf32>, vector<2x128xf32> -> vector<2x128xf32>
        %c0_28 = arith.constant 0 : index
        %c0_29 = arith.constant 0 : index
        %c0_30 = arith.constant 0 : index
        %37 = vector.load %arg9[%c0_28, %c0_29, %c0_30] : memref<1x2x128xf32, #tpu.memory_space<vmem>>, vector<1x2x128xf32>
        %38 = vector.shape_cast %37 : vector<1x2x128xf32> to vector<2x128xf32>
        %39 = vector.shape_cast %36 : vector<2x128xf32> to vector<1x2x128xf32>
        tpu.vector_store %arg9[%c0_28, %c0_29, %c0_30], %39 {strides = array<i32>} : memref<1x2x128xf32, #tpu.memory_space<vmem>>, vector<1x2x128xf32>,
      } else {
      }
    } else {
    }
    return
  }
  func.func @transform_0(%arg0: i32, %arg1: i32, %arg2: i32) -> (i32, i32, i32) {
    %c0_i32 = arith.constant 0 : i32
    %c0_i32_0 = arith.constant 0 : i32
    return %arg0, %c0_i32, %arg2 : i32, i32, i32
  }
  func.func @transform_1(%arg0: i32, %arg1: i32, %arg2: i32) -> (i32, i32, i32) {
    %0 = arith.muli %arg1, %arg2 : i32
    %c0_i32 = arith.constant 0 : i32
    %c0_i32_0 = arith.constant 0 : i32
    return %arg0, %0, %c0_i32 : i32, i32, i32
  }
  func.func @transform_2(%arg0: i32, %arg1: i32, %arg2: i32) -> (i32, i32, i32) {
    %c0_i32 = arith.constant 0 : i32
    %c0_i32_0 = arith.constant 0 : i32
    %c0_i32_1 = arith.constant 0 : i32
    return %arg0, %c0_i32, %c0_i32_0 : i32, i32, i32
  }
  func.func @transform_3(%arg0: i32, %arg1: i32, %arg2: i32) -> (i32, i32) {
    %c0_i32 = arith.constant 0 : i32
    %c0_i32_0 = arith.constant 0 : i32
    %c0_i32_1 = arith.constant 0 : i32
    return %c0_i32, %c0_i32_0 : i32, i32
  }
  func.func @transform_4(%arg0: i32, %arg1: i32, %arg2: i32) -> (i32, i32) {
    %c0_i32 = arith.constant 0 : i32
    %c0_i32_0 = arith.constant 0 : i32
    %c0_i32_1 = arith.constant 0 : i32
    return %c0_i32, %c0_i32_0 : i32, i32
  }
  func.func @transform_5(%arg0: i32, %arg1: i32, %arg2: i32) -> (i32, i32) {
    %c0_i32 = arith.constant 0 : i32
    %c0_i32_0 = arith.constant 0 : i32
    %c0_i32_1 = arith.constant 0 : i32
    return %c0_i32, %c0_i32_0 : i32, i32
  }
  func.func @transform_6(%arg0: i32, %arg1: i32, %arg2: i32) -> (i32, i32, i32) {
    %c0_i32 = arith.constant 0 : i32
    %c0_i32_0 = arith.constant 0 : i32
    %c0_i32_1 = arith.constant 0 : i32
    return %arg0, %c0_i32, %c0_i32_0 : i32, i32, i32
  }
}

</mosaic_0001>

<llo_original>
// kernel: tpu_custom_call.1
$region0: #{tpu_custom_call.1}
  #allocation0 [shape = 'u32[]', space=smem, size = 0x4, offset = 0x4, fixed_abs, tag = 'smem constant byte address 0x4 - core index']
  #allocation1 [shape = 'u32[144,128]{1,0:T(1,128)}', space=vmem, size = 0x12000, scoped, tag = 'internal scratch']
  #allocation2 [shape = 'f32[8,1]{1,0:T(8,128)}', space=vmem, size = 0x1000, scoped, tag = 'scratch operand']
  #allocation3 [shape = 'f32[8,1]{1,0:T(8,128)}', space=vmem, size = 0x1000, scoped, tag = 'scratch operand']
  #allocation4 [shape = 'f32[8,1]{1,0:T(8,128)}', space=vmem, size = 0x1000, scoped, tag = 'scratch operand']
  #allocation5 [shape = 'f32[8,1]{1,0:T(8,128)}', space=vmem, size = 0x1000, scoped, tag = 'scratch operand']
  #allocation6 [shape = 'f32[8,128]{1,0:T(8,128)}', space=vmem, size = 0x1000, scoped, tag = 'scratch operand']
  %s0 = inlined_call_operand.hbm [shape: bf16[2,8,256], index: 0, kind: input, shape index: {}]
  %s1 = inlined_call_operand.hbm [shape: bf16[2,256,128], index: 1, kind: input, shape index: {}]
  %s2 = inlined_call_operand.vmem [shape: bf16[2,8,128], index: 2, kind: input, shape index: {}]
  %s3 = inlined_call_operand.vmem [shape: f32[4,8], index: 3, kind: input, shape index: {}]
  %s4 = inlined_call_operand.vmem [shape: f32[8,4], index: 4, kind: input, shape index: {}]
  %s5 = inlined_call_operand.vmem [shape: f32[2,8], index: 5, kind: input, shape index: {}]
  %s6 = inlined_call_operand.hbm [shape: f32[2,2,128], index: 6, kind: output, shape index: {}]
  %s7 = sld [smem:[#allocation0]]
  $region89: #{tpu_custom_call.1} parent=0
    _
  %s9 = ssub.s32 1, %s7
  %s10 = scalar_select 0, %s9, %s7
  $region1: #{tpu_custom_call.1} parent=0
    #allocation7 [shape = 'u8[4096]{0}', space=vmem, size = 0x1000, scoped, tag = 'input window, operand 0']
    #allocation8 [shape = 's32[2]{0}', space=sflag, size = 0x8, scoped, tag = 'scoped memory for tpu_custom_call.1']
    #allocation9 [shape = 's32[2]{0}', space=sflag, size = 0x8, scoped, tag = 'scoped memory for tpu_custom_call.1']
    #allocation10 [shape = 'u8[65536]{0}', space=vmem, size = 0x10000, scoped, tag = 'input window, operand 1']
    #allocation11 [shape = 's32[2]{0}', space=sflag, size = 0x8, scoped, tag = 'scoped memory for tpu_custom_call.1']
    #allocation12 [shape = 'u8[2048]{0}', space=vmem, size = 0x800, scoped, tag = 'output window, operand 0']
    %11 = vsyncpa [#allocation8], 0
    %s12 = scalar_lea.sflag [#allocation8], 1
    %13 = vsyncpa %s12, 0
    %14 = vsyncpa [#allocation11], 0
    %s15 = scalar_lea.sflag [#allocation11], 1
    %16 = vsyncpa %s15, 0
    %17 = vsyncpa [#allocation9], 0
    %s18 = scalar_lea.sflag [#allocation9], 1
    %19 = vsyncpa %s18, 0
    loop: start=0, step=1, limit=10
    $region2: #{tpu_custom_call.1} parent=1 // loop_pre_header
      _
    $region3: #{tpu_custom_call.1} parent=1 // loop_header
      %s21 = sphi 0, %s25
      %p22 = scmp.ge.s32.totalorder %s21, 10
      %s28 = sphi 0, %s47
      %s29 = sphi 0, %s43
      %s30 = sphi 0, %s39
      %s31 = sphi 0, %s28
      %s32 = sphi 0, %s29
      %s33 = sphi 0, %s30
      %s34 = sphi 0, %s31
      %s35 = sphi 0, %s32
      %s36 = sphi 0, %s33
      %s52 = sphi 0, %s54
      %s55 = sphi 0, %s52
      %s56 = sphi 0, %s55
      %s72 = sphi 0, %s56
      %s82 = sphi 0, %s84
      %s85 = sphi 0, %s82
      %s86 = sphi 0, %s85
      %s102 = sphi 0, %s86
      %s108 = sphi 0, %s110
      %s111 = sphi 0, %s108
      %s112 = sphi 0, %s111
      %s128 = sphi 0, %s112
      %s132 = sphi 0, %s132
      %s134 = sphi 0, %s132
      %s135 = sphi 0, %s134
      %s149 = sphi 0, %s135
      %s153 = sphi 0, %s153
      %s155 = sphi 0, %s153
      %s156 = sphi 0, %s155
      %s170 = sphi 0, %s156
      %s174 = sphi 0, %s174
      %s176 = sphi 0, %s174
      %s177 = sphi 0, %s176
      %s191 = sphi 0, %s177
      %s197 = sphi 0, %s199
      %s200 = sphi 0, %s197
      %s201 = sphi 0, %s200
      %s217 = sphi 0, %s201
    $region4: #{tpu_custom_call.1} parent=1 // loop_header_branch
      %24 = sbr.rel (%p22) target = $region8
    $region5: #{tpu_custom_call.1} parent=1 // loop_body
      %s26 = ssub.s32 %s21, 1
      %s27 = ssub.s32 %s21, 2
      %s37 = sadd.s32 1, %s30
      %p38 = scmp.ge.s32.totalorder %s37, 2
      %s39 = scalar_select %p38, 0, %s37
      %s40 = sadd.s32 1, %s29
      %s41 = scalar_select %p38, %s40, %s29
      %p42 = scmp.ge.s32.totalorder %s41, 2
      %s43 = scalar_select %p42, 0, %s41
      %s44 = sadd.s32 1, %s28
      %s45 = scalar_select %p42, %s44, %s28
      %p46 = scmp.ge.s32.totalorder %s45, 2
      %s47 = scalar_select %p46, 0, %s45
      %s48 = ssub.s32 %s28, %s47
      %s49 = ssub.s32 %s30, %s39
      %s50 = sor.u32 %s48, %s49
      %p51 = scmp.eq.s32.totalorder %s50, 0
      %s53 = sadd.s32 %s52, 1
      %s54 = scalar_select %p51, %s52, %s53
      %p57 = pneg %p51
      %p58 = scmp.eq.s32.totalorder %s21, 7
      %p59 = por %p57, %p58
      %p60 = scmp.ne.s32.totalorder %s52, %s55
      %p61 = scmp.eq.s32.totalorder %s21, 0
      %p62 = por %p60, %p61
      %p63 = scmp.ne.s32.totalorder %s52, %s55
      %p64 = scmp.eq.s32.totalorder %s26, 7
      %p65 = por %p63, %p64
      %p66 = scmp.ne.s32.totalorder %s55, %s56
      %p67 = scmp.eq.s32.totalorder %s26, 0
      %p68 = por %p66, %p67
      %p69 = scmp.ne.s32.totalorder %s55, %s56
      %p70 = scmp.eq.s32.totalorder %s27, 7
      %p71 = por %p69, %p70
      %p73 = scmp.ne.s32.totalorder %s56, %s72
      %p74 = scmp.eq.s32.totalorder %s27, 0
      %p75 = por %p73, %p74
      %s76 = smul.u32 %s29, %s30
      %s77 = smul.u32 %s43, %s39
      %s78 = ssub.s32 %s28, %s47
      %s79 = ssub.s32 %s76, %s77
      %s80 = sor.u32 %s78, %s79
      %p81 = scmp.eq.s32.totalorder %s80, 0
      %s83 = sadd.s32 %s82, 1
      %s84 = scalar_select %p81, %s82, %s83
      %p87 = pneg %p81
      %p88 = scmp.eq.s32.totalorder %s21, 7
      %p89 = por %p87, %p88
      %p90 = scmp.ne.s32.totalorder %s82, %s85
      %p91 = scmp.eq.s32.totalorder %s21, 0
      %p92 = por %p90, %p91
      %p93 = scmp.ne.s32.totalorder %s82, %s85
      %p94 = scmp.eq.s32.totalorder %s26, 7
      %p95 = por %p93, %p94
      %p96 = scmp.ne.s32.totalorder %s85, %s86
      %p97 = scmp.eq.s32.totalorder %s26, 0
      %p98 = por %p96, %p97
      %p99 = scmp.ne.s32.totalorder %s85, %s86
      %p100 = scmp.eq.s32.totalorder %s27, 7
      %p101 = por %p99, %p100
      %p103 = scmp.ne.s32.totalorder %s86, %s102
      %p104 = scmp.eq.s32.totalorder %s27, 0
      %p105 = por %p103, %p104
      %s106 = ssub.s32 %s28, %s47
      %p107 = scmp.eq.s32.totalorder %s106, 0
      %s109 = sadd.s32 %s108, 1
      %s110 = scalar_select %p107, %s108, %s109
      %p113 = pneg %p107
      %p114 = scmp.eq.s32.totalorder %s21, 7
      %p115 = por %p113, %p114
      %p116 = scmp.ne.s32.totalorder %s108, %s111
      %p117 = scmp.eq.s32.totalorder %s21, 0
      %p118 = por %p116, %p117
      %p119 = scmp.ne.s32.totalorder %s108, %s111
      %p120 = scmp.eq.s32.totalorder %s26, 7
      %p121 = por %p119, %p120
      %p122 = scmp.ne.s32.totalorder %s111, %s112
      %p123 = scmp.eq.s32.totalorder %s26, 0
      %p124 = por %p122, %p123
      %p125 = scmp.ne.s32.totalorder %s111, %s112
      %p126 = scmp.eq.s32.totalorder %s27, 7
      %p127 = por %p125, %p126
      %p129 = scmp.ne.s32.totalorder %s112, %s128
      %p130 = scmp.eq.s32.totalorder %s27, 0
      %p131 = por %p129, %p130
      %s133 = sadd.s32 %s132, 1
      %p136 = scmp.eq.s32.totalorder %s21, 7
      %p137 = scmp.ne.s32.totalorder %s132, %s134
      %p138 = scmp.eq.s32.totalorder %s21, 0
      %p139 = por %p137, %p138
      %p140 = scmp.ne.s32.totalorder %s132, %s134
      %p141 = scmp.eq.s32.totalorder %s26, 7
      %p142 = por %p140, %p141
      %p143 = scmp.ne.s32.totalorder %s134, %s135
      %p144 = scmp.eq.s32.totalorder %s26, 0
      %p145 = por %p143, %p144
      %p146 = scmp.ne.s32.totalorder %s134, %s135
      %p147 = scmp.eq.s32.totalorder %s27, 7
      %p148 = por %p146, %p147
      %p150 = scmp.ne.s32.totalorder %s135, %s149
      %p151 = scmp.eq.s32.totalorder %s27, 0
      %p152 = por %p150, %p151
      %s154 = sadd.s32 %s153, 1
      %p157 = scmp.eq.s32.totalorder %s21, 7
      %p158 = scmp.ne.s32.totalorder %s153, %s155
      %p159 = scmp.eq.s32.totalorder %s21, 0
      %p160 = por %p158, %p159
      %p161 = scmp.ne.s32.totalorder %s153, %s155
      %p162 = scmp.eq.s32.totalorder %s26, 7
      %p163 = por %p161, %p162
      %p164 = scmp.ne.s32.totalorder %s155, %s156
      %p165 = scmp.eq.s32.totalorder %s26, 0
      %p166 = por %p164, %p165
      %p167 = scmp.ne.s32.totalorder %s155, %s156
      %p168 = scmp.eq.s32.totalorder %s27, 7
      %p169 = por %p167, %p168
      %p171 = scmp.ne.s32.totalorder %s156, %s170
      %p172 = scmp.eq.s32.totalorder %s27, 0
      %p173 = por %p171, %p172
      %s175 = sadd.s32 %s174, 1
      %p178 = scmp.eq.s32.totalorder %s21, 7
      %p179 = scmp.ne.s32.totalorder %s174, %s176
      %p180 = scmp.eq.s32.totalorder %s21, 0
      %p181 = por %p179, %p180
      %p182 = scmp.ne.s32.totalorder %s174, %s176
      %p183 = scmp.eq.s32.totalorder %s26, 7
      %p184 = por %p182, %p183
      %p185 = scmp.ne.s32.totalorder %s176, %s177
      %p186 = scmp.eq.s32.totalorder %s26, 0
      %p187 = por %p185, %p186
      %p188 = scmp.ne.s32.totalorder %s176, %s177
      %p189 = scmp.eq.s32.totalorder %s27, 7
      %p190 = por %p188, %p189
      %p192 = scmp.ne.s32.totalorder %s177, %s191
      %p193 = scmp.eq.s32.totalorder %s27, 0
      %p194 = por %p192, %p193
      %s195 = ssub.s32 %s28, %s47
      %p196 = scmp.eq.s32.totalorder %s195, 0
      %s198 = sadd.s32 %s197, 1
      %s199 = scalar_select %p196, %s197, %s198
      %p202 = pneg %p196
      %p203 = scmp.eq.s32.totalorder %s21, 7
      %p204 = por %p202, %p203
      %p205 = scmp.ne.s32.totalorder %s197, %s200
      %p206 = scmp.eq.s32.totalorder %s21, 0
      %p207 = por %p205, %p206
      %p208 = scmp.ne.s32.totalorder %s197, %s200
      %p209 = scmp.eq.s32.totalorder %s26, 7
      %p210 = por %p208, %p209
      %p211 = scmp.ne.s32.totalorder %s200, %s201
      %p212 = scmp.eq.s32.totalorder %s26, 0
      %p213 = por %p211, %p212
      %p214 = scmp.ne.s32.totalorder %s200, %s201
      %p215 = scmp.eq.s32.totalorder %s27, 7
      %p216 = por %p214, %p215
      %p218 = scmp.ne.s32.totalorder %s201, %s217
      %p219 = scmp.eq.s32.totalorder %s27, 0
      %p220 = por %p218, %p219
      %p221 = scmp.le.s32.totalorder 1, %s21
      %p222 = scmp.lt.s32.totalorder %s21, 9
      %p223 = pnand %p221, %p222
      %p224 = pneg %p223
      // Predicated region
      $region9: #{tpu_custom_call.1} parent=5 // pred_check
        _
      $region10: #{tpu_custom_call.1} parent=5 // pred_check_branch
        %226 = sbr.rel (%p223) target = $region12
      $region11: #{tpu_custom_call.1} parent=5 // pred_region
        %s227 = ssub.s32 %s21, 1
        // Predicated region
        $region13: #{tpu_custom_call.1} parent=11 // pred_check
          %p228 = pneg %p145
        $region14: #{tpu_custom_call.1} parent=11 // pred_check_branch
          %230 = sbr.rel (%p228) target = $region16
        $region15: #{tpu_custom_call.1} parent=11 // pred_region
          _
        $region16: #{tpu_custom_call.1} parent=11 // pred_fallthru
          _
        // Predicated region
        $region17: #{tpu_custom_call.1} parent=11 // pred_check
          %p231 = pneg %p166
        $region18: #{tpu_custom_call.1} parent=11 // pred_check_branch
          %233 = sbr.rel (%p231) target = $region20
        $region19: #{tpu_custom_call.1} parent=11 // pred_region
          _
        $region20: #{tpu_custom_call.1} parent=11 // pred_fallthru
          _
        // Predicated region
        $region21: #{tpu_custom_call.1} parent=11 // pred_check
          %p234 = pneg %p187
        $region22: #{tpu_custom_call.1} parent=11 // pred_check_branch
          %236 = sbr.rel (%p234) target = $region24
        $region23: #{tpu_custom_call.1} parent=11 // pred_region
          _
        $region24: #{tpu_custom_call.1} parent=11 // pred_fallthru
          _
      $region12: #{tpu_custom_call.1} parent=5 // pred_fallthru
        _
      %p237 = scmp.lt.s32.totalorder %s21, 8
      // Predicated region
      $region25: #{tpu_custom_call.1} parent=5 // pred_check
        %p238 = pneg %p237
      $region26: #{tpu_custom_call.1} parent=5 // pred_check_branch
        %240 = sbr.rel (%p238) target = $region28
      $region27: #{tpu_custom_call.1} parent=5 // pred_region
        // Predicated region
        $region29: #{tpu_custom_call.1} parent=27 // pred_check
          %p241 = pneg %p62
        $region30: #{tpu_custom_call.1} parent=27 // pred_check_branch
          %243 = sbr.rel (%p241) target = $region32
        $region31: #{tpu_custom_call.1} parent=27 // pred_region
          %s244 = sand.u32 %s52, 1
          %s245 = scalar_lea.sflag [#allocation8], %s244
          %s246 = sand.u32 %s52, 1
          %s247 = smul.addr %s246, 4
          %s248 = scalar_lea.vmem [#allocation7], %s247
          %s250 = ssub.s32 64, 64
          %251 = vsyncadd %s245, %s250
          %s252 = smul.addr %s28, 2
          %s253 = sadd.s32 %s30, %s252
          %s254 = smul.addr %s253, 64
          %s255 = scalar_lea.hbm %s0, %s254
          %s257 = sshll.u32 %s248, 4
          %s258 = int_to_ptr.vmem [resolvable:$true] %s257
          %260 = dma.hbm_to_vmem [thread:$0]  %s255, 64, %s258, %s245
        $region32: #{tpu_custom_call.1} parent=27 // pred_fallthru
          _
        // Predicated region
        $region33: #{tpu_custom_call.1} parent=27 // pred_check
          %p261 = pneg %p92
        $region34: #{tpu_custom_call.1} parent=27 // pred_check_branch
          %263 = sbr.rel (%p261) target = $region36
        $region35: #{tpu_custom_call.1} parent=27 // pred_region
          %s264 = sand.u32 %s82, 1
          %s265 = scalar_lea.sflag [#allocation11], %s264
          %s266 = sand.u32 %s82, 1
          %s267 = smul.addr %s266, 64
          %s268 = scalar_lea.vmem [#allocation10], %s267
          %s269 = smul.u32 %s29, %s30
          %s270 = smul.u32 16, %s269
          %s272 = ssub.s32 1024, 1024
          %273 = vsyncadd %s265, %s272
          %s274 = smul.addr %s28, 32
          %s275 = sadd.s32 %s270, %s274
          %s276 = smul.addr %s275, 64
          %s277 = scalar_lea.hbm %s1, %s276
          %s278 = sshll.u32 %s268, 4
          %s279 = int_to_ptr.vmem [resolvable:$true] %s278
          %284 = dma.hbm_to_vmem [thread:$0]  %s277, 1024, %s279, %s265, 64, 64, 4
        $region36: #{tpu_custom_call.1} parent=27 // pred_fallthru
          _
        // Predicated region
        $region37: #{tpu_custom_call.1} parent=27 // pred_check
          %p285 = pneg %p118
        $region38: #{tpu_custom_call.1} parent=27 // pred_check_branch
          %287 = sbr.rel (%p285) target = $region40
        $region39: #{tpu_custom_call.1} parent=27 // pred_region
          %p288 = scmp.lt.s32.totalorder %s28, 1
          %s289 = scalar_select %p288, %s28, 1
          %s290 = smul.addr %s289, 4
          %s291 = scalar_lea.vmem %s2, %s290
        $region40: #{tpu_custom_call.1} parent=27 // pred_fallthru
          _
      $region28: #{tpu_custom_call.1} parent=5 // pred_fallthru
        _
      %p292 = scmp.le.s32.totalorder 1, %s21
      %p293 = scmp.lt.s32.totalorder %s21, 9
      %p294 = pnand %p292, %p293
      %p295 = pneg %p294
      // Predicated region
      $region41: #{tpu_custom_call.1} parent=5 // pred_check
        _
      $region42: #{tpu_custom_call.1} parent=5 // pred_check_branch
        %297 = sbr.rel (%p294) target = $region44
      $region43: #{tpu_custom_call.1} parent=5 // pred_region
        %s298 = ssub.s32 %s21, 1
        %s299 = sand.u32 %s55, 1
        %s300 = scalar_lea.sflag [#allocation8], %s299
        %s301 = sand.u32 %s55, 1
        %s302 = smul.addr %s301, 4
        %s303 = scalar_lea.vmem [#allocation7], %s302
        // Predicated region
        $region45: #{tpu_custom_call.1} parent=43 // pred_check
          %p304 = pneg %p68
        $region46: #{tpu_custom_call.1} parent=43 // pred_check_branch
          %306 = sbr.rel (%p304) target = $region48
        $region47: #{tpu_custom_call.1} parent=43 // pred_region
          %307 = dma.done %s300, 64
        $region48: #{tpu_custom_call.1} parent=43 // pred_fallthru
          _
        %s308 = sand.u32 %s85, 1
        %s309 = scalar_lea.sflag [#allocation11], %s308
        %s310 = sand.u32 %s85, 1
        %s311 = smul.addr %s310, 64
        %s312 = scalar_lea.vmem [#allocation10], %s311
        // Predicated region
        $region49: #{tpu_custom_call.1} parent=43 // pred_check
          %p313 = pneg %p98
        $region50: #{tpu_custom_call.1} parent=43 // pred_check_branch
          %315 = sbr.rel (%p313) target = $region52
        $region51: #{tpu_custom_call.1} parent=43 // pred_region
          %316 = dma.done %s309, 1024
        $region52: #{tpu_custom_call.1} parent=43 // pred_fallthru
          _
        %s317 = sand.u32 %s55, 1
        %s318 = scalar_lea.sflag [#allocation8], %s317
        %s319 = sand.u32 %s55, 1
        %s320 = smul.addr %s319, 4
        %s321 = scalar_lea.vmem [#allocation7], %s320
        %p322 = pneg %p68
        %p323 = pneg %p65
        %s324 = sand.u32 %s85, 1
        %s325 = scalar_lea.sflag [#allocation11], %s324
        %s326 = sand.u32 %s85, 1
        %s327 = smul.addr %s326, 64
        %s328 = scalar_lea.vmem [#allocation10], %s327
        %p329 = pneg %p98
        %p330 = pneg %p95
        %p331 = scmp.lt.s32.totalorder %s31, 1
        %s332 = scalar_select %p331, %s31, 1
        %s333 = smul.addr %s332, 4
        %s334 = scalar_lea.vmem %s2, %s333
        %p335 = pneg %p124
        %p336 = pneg %p121
        %p337 = pneg %p145
        %p338 = pneg %p142
        %p339 = pneg %p166
        %p340 = pneg %p163
        %p341 = pneg %p187
        %p342 = pneg %p184
        %p343 = pneg %p213
        %p344 = pneg %p210
        %s345 = sand.u32 %s200, 1
        %s346 = scalar_lea.sflag [#allocation9], %s345
        %s347 = sand.u32 %s200, 1
        %s348 = smul.addr %s347, 2
        %s349 = scalar_lea.vmem [#allocation12], %s348
        %s350 = smul.u32 %s32, %s33
        %s351 = smul.u32 16, %s350
        %p352 = scmp.lt.s32.totalorder %s31, 1
        %s353 = scalar_select %p352, %s31, 1
        %s354 = smul.addr %s353, 4
        %s355 = scalar_lea.vmem %s2, %s354
        %v357 = vld [vmem:[%s303] sm:$0xf]
        %v358 = vunpack.c.l.bf16 %v357
        %p359 = scmp.eq.s32.totalorder %s32, 0
        // Predicated region
        $region53: #{tpu_custom_call.1} parent=43 // pred_check
          %p360 = pneg %p359
        $region54: #{tpu_custom_call.1} parent=43 // pred_check_branch
          %362 = sbr.rel (%p360) target = $region56
        $region55: #{tpu_custom_call.1} parent=43 // pred_region
          %p363 = scmp.eq.s32.totalorder %s33, 0
          // Predicated region
          $region57: #{tpu_custom_call.1} parent=55 // pred_check
            %p364 = pneg %p363
          $region58: #{tpu_custom_call.1} parent=55 // pred_check_branch
            %366 = sbr.rel (%p364) target = $region60
          $region59: #{tpu_custom_call.1} parent=55 // pred_region
            %vm367 = vcmask 7168
            %368 = vst.msk [vmem:[#allocation2] sm:$0xff] %vm367, 0.0
            %369 = vst.msk [vmem:[#allocation3] sm:$0xff] %vm367, 0.0
          $region60: #{tpu_custom_call.1} parent=55 // pred_fallthru
            _
          %v370 = vld [vmem:[#allocation2] sm:$0xff]
          %371 = vadd.xlane.f32.xlu0 %v358
          %v372 = vpop.xlane.xlu0 %371
          %v373 = vadd.f32 %v370, %v372
          %vm374 = vcmask 7168
          %375 = vst.msk [vmem:[#allocation2] sm:$0xff] %vm374, %v373
          %v376 = vld [vmem:[#allocation3] sm:$0xff]
          %v377 = vmul.f32 %v358, %v358
          %378 = vadd.xlane.f32.xlu0 %v377
          %v379 = vpop.xlane.xlu0 %378
          %v380 = vadd.f32 %v376, %v379
          %381 = vst.msk [vmem:[#allocation3] sm:$0xff] %vm374, %v380
          %p382 = scmp.eq.s32.totalorder %s33, 1
          // Predicated region
          $region61: #{tpu_custom_call.1} parent=55 // pred_check
            %p383 = pneg %p382
          $region62: #{tpu_custom_call.1} parent=55 // pred_check_branch
            %385 = sbr.rel (%p383) target = $region64
          $region63: #{tpu_custom_call.1} parent=55 // pred_region
            %v386 = vld [vmem:[%s3] sm:$0xf]
            %v387 = vld [vmem:[#allocation2] sm:$0xff]
            %vm388 = vcmask 64512
            %v390 = vsel %vm388, %v386, 0
            %392 = vmatprep.subr.mxu0 0.0
            %393 = vmatpush1.msra.mxu0 %v387
            %394 = vmatprep.subr.mxu0 0.0
            %395 = vmatpush1.msra.mxu0 0.0
            %396 = vmatprep.subr.mxu0 0.0
            %397 = vmatpush1.msra.mxu0 0.0
            %398 = vmatprep.subr.mxu0 0.0
            %399 = vmatpush1.msra.mxu0 0.0
            %400 = vmatprep.subr.mxu0 0.0
            %401 = vmatpush1.msra.mxu0 0.0
            %402 = vmatprep.subr.mxu0 0.0
            %403 = vmatpush1.msra.mxu0 0.0
            %404 = vmatprep.subr.mxu0 0.0
            %405 = vmatpush1.msra.mxu0 0.0
            %406 = vmatprep.subr.mxu0 0.0
            %407 = vmatpush1.msra.mxu0 0.0
            %408 = vmatprep.subr.mxu0 0.0
            %409 = vmatpush1.msra.mxu0 0.0
            %410 = vmatprep.subr.mxu0 0.0
            %411 = vmatpush1.msra.mxu0 0.0
            %412 = vmatprep.subr.mxu0 0.0
            %413 = vmatpush1.msra.mxu0 0.0
            %414 = vmatprep.subr.mxu0 0.0
            %415 = vmatpush1.msra.mxu0 0.0
            %416 = vmatprep.subr.mxu0 0.0
            %417 = vmatpush1.msra.mxu0 0.0
            %418 = vmatprep.subr.mxu0 0.0
            %419 = vmatpush1.msra.mxu0 0.0
            %420 = vmatprep.subr.mxu0 0.0
            %421 = vmatpush1.msra.mxu0 0.0
            %422 = vmatprep.subr.mxu0 0.0
            %423 = vmatpush1.msra.mxu0 0.0
            %424 = vmatprep.subr.mxu0 0.0
            %425 = vmatpush1.msra.mxu0 0.0
            %426 = vmatprep.subr.mxu0 0.0
            %427 = vmatpush1.msra.mxu0 0.0
            %428 = vmatprep.subr.mxu0 0.0
            %429 = vmatpush1.msra.mxu0 0.0
            %430 = vmatprep.subr.mxu0 0.0
            %431 = vmatpush1.msra.mxu0 0.0
            %432 = vmatprep.subr.mxu0 0.0
            %433 = vmatpush1.msra.mxu0 0.0
            %434 = vmatprep.subr.mxu0 0.0
            %435 = vmatpush1.msra.mxu0 0.0
            %436 = vmatprep.subr.mxu0 0.0
            %437 = vmatpush1.msra.mxu0 0.0
            %438 = vmatprep.subr.mxu0 0.0
            %439 = vmatpush1.msra.mxu0 0.0
            %440 = vmatprep.subr.mxu0 0.0
            %441 = vmatpush1.msra.mxu0 0.0
            %442 = vmatprep.subr.mxu0 0.0
            %443 = vmatpush1.msra.mxu0 0.0
            %444 = vmatprep.subr.mxu0 0.0
            %445 = vmatpush1.msra.mxu0 0.0
            %446 = vmatprep.subr.mxu0 0.0
            %447 = vmatpush1.msra.mxu0 0.0
            %448 = vmatprep.subr.mxu0 0.0
            %449 = vmatpush1.msra.mxu0 0.0
            %450 = vmatprep.subr.mxu0 0.0
            %451 = vmatpush1.msra.mxu0 0.0
            %452 = vmatprep.subr.mxu0 0.0
            %453 = vmatpush1.msra.mxu0 0.0
            %454 = vmatprep.subr.mxu0 0.0
            %455 = vmatpush1.msra.mxu0 0.0
            %456 = vmatprep.mubr.f32.mxu0 0.0
            %457 = vmatmul.mubr.f32.gmra.mrb[0].mxu0 %v390
            %v458 = vpop.f32.mrb[0].mxu0
            %v459 = vadd.f32 0.0, %v458
            %v460 = vpop.f32.mrb[0].mxu0
            %461 = vdwg.mxu0
            %v462 = vld [vmem:[#allocation3] sm:$0xff]
            %463 = vmatprep.subr.mxu0 0.0
            %464 = vmatpush1.msra.mxu0 %v462
            %465 = vmatprep.subr.mxu0 0.0
            %466 = vmatpush1.msra.mxu0 0.0
            %467 = vmatprep.subr.mxu0 0.0
            %468 = vmatpush1.msra.mxu0 0.0
            %469 = vmatprep.subr.mxu0 0.0
            %470 = vmatpush1.msra.mxu0 0.0
            %471 = vmatprep.subr.mxu0 0.0
            %472 = vmatpush1.msra.mxu0 0.0
            %473 = vmatprep.subr.mxu0 0.0
            %474 = vmatpush1.msra.mxu0 0.0
            %475 = vmatprep.subr.mxu0 0.0
            %476 = vmatpush1.msra.mxu0 0.0
            %477 = vmatprep.subr.mxu0 0.0
            %478 = vmatpush1.msra.mxu0 0.0
            %479 = vmatprep.subr.mxu0 0.0
            %480 = vmatpush1.msra.mxu0 0.0
            %481 = vmatprep.subr.mxu0 0.0
            %482 = vmatpush1.msra.mxu0 0.0
            %483 = vmatprep.subr.mxu0 0.0
            %484 = vmatpush1.msra.mxu0 0.0
            %485 = vmatprep.subr.mxu0 0.0
            %486 = vmatpush1.msra.mxu0 0.0
            %487 = vmatprep.subr.mxu0 0.0
            %488 = vmatpush1.msra.mxu0 0.0
            %489 = vmatprep.subr.mxu0 0.0
            %490 = vmatpush1.msra.mxu0 0.0
            %491 = vmatprep.subr.mxu0 0.0
            %492 = vmatpush1.msra.mxu0 0.0
            %493 = vmatprep.subr.mxu0 0.0
            %494 = vmatpush1.msra.mxu0 0.0
            %495 = vmatprep.subr.mxu0 0.0
            %496 = vmatpush1.msra.mxu0 0.0
            %497 = vmatprep.subr.mxu0 0.0
            %498 = vmatpush1.msra.mxu0 0.0
            %499 = vmatprep.subr.mxu0 0.0
            %500 = vmatpush1.msra.mxu0 0.0
            %501 = vmatprep.subr.mxu0 0.0
            %502 = vmatpush1.msra.mxu0 0.0
            %503 = vmatprep.subr.mxu0 0.0
            %504 = vmatpush1.msra.mxu0 0.0
            %505 = vmatprep.subr.mxu0 0.0
            %506 = vmatpush1.msra.mxu0 0.0
            %507 = vmatprep.subr.mxu0 0.0
            %508 = vmatpush1.msra.mxu0 0.0
            %509 = vmatprep.subr.mxu0 0.0
            %510 = vmatpush1.msra.mxu0 0.0
            %511 = vmatprep.subr.mxu0 0.0
            %512 = vmatpush1.msra.mxu0 0.0
            %513 = vmatprep.subr.mxu0 0.0
            %514 = vmatpush1.msra.mxu0 0.0
            %515 = vmatprep.subr.mxu0 0.0
            %516 = vmatpush1.msra.mxu0 0.0
            %517 = vmatprep.subr.mxu0 0.0
            %518 = vmatpush1.msra.mxu0 0.0
            %519 = vmatprep.subr.mxu0 0.0
            %520 = vmatpush1.msra.mxu0 0.0
            %521 = vmatprep.subr.mxu0 0.0
            %522 = vmatpush1.msra.mxu0 0.0
            %523 = vmatprep.subr.mxu0 0.0
            %524 = vmatpush1.msra.mxu0 0.0
            %525 = vmatprep.subr.mxu0 0.0
            %526 = vmatpush1.msra.mxu0 0.0
            %527 = vmatprep.mubr.f32.mxu0 0.0
            %528 = vmatmul.mubr.f32.gmra.mrb[0].mxu0 %v390
            %v529 = vpop.f32.mrb[0].mxu0
            %v530 = vadd.f32 0.0, %v529
            %v531 = vpop.f32.mrb[0].mxu0
            %532 = vdwg.mxu0
            %v533 = vmul.f32 %v459, 0.001953125
            %v534 = vmul.f32 %v530, 0.001953125
            %v535 = vmul.f32 %v533, %v533
            %v536 = vsub.f32 %v534, %v535
            %v537 = vadd.f32 %v536, 0.0001
            %v538 = vrsqrt.pop %v537
            %v539 = vld [vmem:[%s4] sm:$0xff]
            %vm540 = vcmask 31744
            %v542 = vsel %vm540, %v539, 0
            %vm544 = vcmask 1043456
            %v546 = vsel %vm544, %v533, 0
            %548 = vmatprep.subr.mxu0 0.0
            %549 = vmatpush1.msra.mxu0 %v546
            %550 = vmatprep.subr.mxu0 0.0
            %551 = vmatpush1.msra.mxu0 0.0
            %552 = vmatprep.subr.mxu0 0.0
            %553 = vmatpush1.msra.mxu0 0.0
            %554 = vmatprep.subr.mxu0 0.0
            %555 = vmatpush1.msra.mxu0 0.0
            %556 = vmatprep.subr.mxu0 0.0
            %557 = vmatpush1.msra.mxu0 0.0
            %558 = vmatprep.subr.mxu0 0.0
            %559 = vmatpush1.msra.mxu0 0.0
            %560 = vmatprep.subr.mxu0 0.0
            %561 = vmatpush1.msra.mxu0 0.0
            %562 = vmatprep.subr.mxu0 0.0
            %563 = vmatpush1.msra.mxu0 0.0
            %564 = vmatprep.subr.mxu0 0.0
            %565 = vmatpush1.msra.mxu0 0.0
            %566 = vmatprep.subr.mxu0 0.0
            %567 = vmatpush1.msra.mxu0 0.0
            %568 = vmatprep.subr.mxu0 0.0
            %569 = vmatpush1.msra.mxu0 0.0
            %570 = vmatprep.subr.mxu0 0.0
            %571 = vmatpush1.msra.mxu0 0.0
            %572 = vmatprep.subr.mxu0 0.0
            %573 = vmatpush1.msra.mxu0 0.0
            %574 = vmatprep.subr.mxu0 0.0
            %575 = vmatpush1.msra.mxu0 0.0
            %576 = vmatprep.subr.mxu0 0.0
            %577 = vmatpush1.msra.mxu0 0.0
            %578 = vmatprep.subr.mxu0 0.0
            %579 = vmatpush1.msra.mxu0 0.0
            %580 = vmatprep.subr.mxu0 0.0
            %581 = vmatpush1.msra.mxu0 0.0
            %582 = vmatprep.subr.mxu0 0.0
            %583 = vmatpush1.msra.mxu0 0.0
            %584 = vmatprep.subr.mxu0 0.0
            %585 = vmatpush1.msra.mxu0 0.0
            %586 = vmatprep.subr.mxu0 0.0
            %587 = vmatpush1.msra.mxu0 0.0
            %588 = vmatprep.subr.mxu0 0.0
            %589 = vmatpush1.msra.mxu0 0.0
            %590 = vmatprep.subr.mxu0 0.0
            %591 = vmatpush1.msra.mxu0 0.0
            %592 = vmatprep.subr.mxu0 0.0
            %593 = vmatpush1.msra.mxu0 0.0
            %594 = vmatprep.subr.mxu0 0.0
            %595 = vmatpush1.msra.mxu0 0.0
            %596 = vmatprep.subr.mxu0 0.0
            %597 = vmatpush1.msra.mxu0 0.0
            %598 = vmatprep.subr.mxu0 0.0
            %599 = vmatpush1.msra.mxu0 0.0
            %600 = vmatprep.subr.mxu0 0.0
            %601 = vmatpush1.msra.mxu0 0.0
            %602 = vmatprep.subr.mxu0 0.0
            %603 = vmatpush1.msra.mxu0 0.0
            %604 = vmatprep.subr.mxu0 0.0
            %605 = vmatpush1.msra.mxu0 0.0
            %606 = vmatprep.subr.mxu0 0.0
            %607 = vmatpush1.msra.mxu0 0.0
            %608 = vmatprep.subr.mxu0 0.0
            %609 = vmatpush1.msra.mxu0 0.0
            %610 = vmatprep.subr.mxu0 0.0
            %611 = vmatpush1.msra.mxu0 0.0
            %612 = vmatprep.mubr.f32.mxu0 0.0
            %613 = vmatmul.mubr.f32.gmra.mrb[0].mxu0 %v542
            %v614 = vpop.f32.mrb[0].mxu0
            %v615 = vadd.f32 0.0, %v614
            %v616 = vpop.f32.mrb[0].mxu0
            %617 = vdwg.mxu0
            %618 = vst.msk [vmem:[#allocation4] sm:$0xff] %vm374, %v615
            %v619 = vld [vmem:[%s4] sm:$0xff]
            %v621 = vsel %vm540, %v619, 0
            %v624 = vsel %vm544, %v538, 0
            %626 = vmatprep.subr.mxu0 0.0
            %627 = vmatpush1.msra.mxu0 %v624
            %628 = vmatprep.subr.mxu0 0.0
            %629 = vmatpush1.msra.mxu0 0.0
            %630 = vmatprep.subr.mxu0 0.0
            %631 = vmatpush1.msra.mxu0 0.0
            %632 = vmatprep.subr.mxu0 0.0
            %633 = vmatpush1.msra.mxu0 0.0
            %634 = vmatprep.subr.mxu0 0.0
            %635 = vmatpush1.msra.mxu0 0.0
            %636 = vmatprep.subr.mxu0 0.0
            %637 = vmatpush1.msra.mxu0 0.0
            %638 = vmatprep.subr.mxu0 0.0
            %639 = vmatpush1.msra.mxu0 0.0
            %640 = vmatprep.subr.mxu0 0.0
            %641 = vmatpush1.msra.mxu0 0.0
            %642 = vmatprep.subr.mxu0 0.0
            %643 = vmatpush1.msra.mxu0 0.0
            %644 = vmatprep.subr.mxu0 0.0
            %645 = vmatpush1.msra.mxu0 0.0
            %646 = vmatprep.subr.mxu0 0.0
            %647 = vmatpush1.msra.mxu0 0.0
            %648 = vmatprep.subr.mxu0 0.0
            %649 = vmatpush1.msra.mxu0 0.0
            %650 = vmatprep.subr.mxu0 0.0
            %651 = vmatpush1.msra.mxu0 0.0
            %652 = vmatprep.subr.mxu0 0.0
            %653 = vmatpush1.msra.mxu0 0.0
            %654 = vmatprep.subr.mxu0 0.0
            %655 = vmatpush1.msra.mxu0 0.0
            %656 = vmatprep.subr.mxu0 0.0
            %657 = vmatpush1.msra.mxu0 0.0
            %658 = vmatprep.subr.mxu0 0.0
            %659 = vmatpush1.msra.mxu0 0.0
            %660 = vmatprep.subr.mxu0 0.0
            %661 = vmatpush1.msra.mxu0 0.0
            %662 = vmatprep.subr.mxu0 0.0
            %663 = vmatpush1.msra.mxu0 0.0
            %664 = vmatprep.subr.mxu0 0.0
            %665 = vmatpush1.msra.mxu0 0.0
            %666 = vmatprep.subr.mxu0 0.0
            %667 = vmatpush1.msra.mxu0 0.0
            %668 = vmatprep.subr.mxu0 0.0
            %669 = vmatpush1.msra.mxu0 0.0
            %670 = vmatprep.subr.mxu0 0.0
            %671 = vmatpush1.msra.mxu0 0.0
            %672 = vmatprep.subr.mxu0 0.0
            %673 = vmatpush1.msra.mxu0 0.0
            %674 = vmatprep.subr.mxu0 0.0
            %675 = vmatpush1.msra.mxu0 0.0
            %676 = vmatprep.subr.mxu0 0.0
            %677 = vmatpush1.msra.mxu0 0.0
            %678 = vmatprep.subr.mxu0 0.0
            %679 = vmatpush1.msra.mxu0 0.0
            %680 = vmatprep.subr.mxu0 0.0
            %681 = vmatpush1.msra.mxu0 0.0
            %682 = vmatprep.subr.mxu0 0.0
            %683 = vmatpush1.msra.mxu0 0.0
            %684 = vmatprep.subr.mxu0 0.0
            %685 = vmatpush1.msra.mxu0 0.0
            %686 = vmatprep.subr.mxu0 0.0
            %687 = vmatpush1.msra.mxu0 0.0
            %688 = vmatprep.subr.mxu0 0.0
            %689 = vmatpush1.msra.mxu0 0.0
            %690 = vmatprep.mubr.f32.mxu0 0.0
            %691 = vmatmul.mubr.f32.gmra.mrb[0].mxu0 %v621
            %v692 = vpop.f32.mrb[0].mxu0
            %v693 = vadd.f32 0.0, %v692
            %v694 = vpop.f32.mrb[0].mxu0
            %695 = vdwg.mxu0
            %696 = vst.msk [vmem:[#allocation5] sm:$0xff] %vm374, %v693
          $region64: #{tpu_custom_call.1} parent=55 // pred_fallthru
            _
        $region56: #{tpu_custom_call.1} parent=43 // pred_fallthru
          _
        %p697 = scmp.eq.s32.totalorder %s32, 1
        // Predicated region
        $region65: #{tpu_custom_call.1} parent=43 // pred_check
          %p698 = pneg %p697
        $region66: #{tpu_custom_call.1} parent=43 // pred_check_branch
          %700 = sbr.rel (%p698) target = $region68
        $region67: #{tpu_custom_call.1} parent=43 // pred_region
          %p701 = scmp.eq.s32.totalorder %s33, 0
          // Predicated region
          $region69: #{tpu_custom_call.1} parent=67 // pred_check
            %p702 = pneg %p701
          $region70: #{tpu_custom_call.1} parent=67 // pred_check_branch
            %704 = sbr.rel (%p702) target = $region72
          $region71: #{tpu_custom_call.1} parent=67 // pred_region
            %705 = vst [vmem:[#allocation6] sm:$0xff] 0.0
          $region72: #{tpu_custom_call.1} parent=67 // pred_fallthru
            _
          %v706 = vld [vmem:[#allocation4] sm:$0xff]
          %708 = vset.pattern.permute.xlu0 0
          %709 = vperm.xlu0 %708, %v706
          %v710 = vpop.permute.xlu0 %709
          %v712 = vsub.f32 %v358, %v710
          %v713 = vmax.f32 %v712, 0.0
          %v714 = vld [vmem:[#allocation6] sm:$0xff]
          %v715 = vpack.c.bf16 %v713, %v713
          %v716 = vld [vmem:[%s312] sm:$0xf]
          %v717 = vld [vmem:[%s312 + $0x4] sm:$0xf]
          %v718 = vld [vmem:[%s312 + $0x8] sm:$0xf]
          %v719 = vld [vmem:[%s312 + $0xc] sm:$0xf]
          %v720 = vld [vmem:[%s312 + $0x10] sm:$0xf]
          %v721 = vld [vmem:[%s312 + $0x14] sm:$0xf]
          %v722 = vld [vmem:[%s312 + $0x18] sm:$0xf]
          %v723 = vld [vmem:[%s312 + $0x1c] sm:$0xf]
          %v724 = vld [vmem:[%s312 + $0x20] sm:$0xf]
          %v725 = vld [vmem:[%s312 + $0x24] sm:$0xf]
          %v726 = vld [vmem:[%s312 + $0x28] sm:$0xf]
          %v727 = vld [vmem:[%s312 + $0x2c] sm:$0xf]
          %v728 = vld [vmem:[%s312 + $0x30] sm:$0xf]
          %v729 = vld [vmem:[%s312 + $0x34] sm:$0xf]
          %v730 = vld [vmem:[%s312 + $0x38] sm:$0xf]
          %v731 = vld [vmem:[%s312 + $0x3c] sm:$0xf]
          %v748 = vunpack.c.l.b16 %v716
          %v749 = vunpack.c.l.b16 %v717
          %v750 = vunpack.c.l.b16 %v718
          %v751 = vunpack.c.l.b16 %v719
          %v752 = vunpack.c.l.b16 %v720
          %v753 = vunpack.c.l.b16 %v721
          %v754 = vunpack.c.l.b16 %v722
          %v755 = vunpack.c.l.b16 %v723
          %v756 = vunpack.c.l.b16 %v724
          %v757 = vunpack.c.l.b16 %v725
          %v758 = vunpack.c.l.b16 %v726
          %v759 = vunpack.c.l.b16 %v727
          %v760 = vunpack.c.l.b16 %v728
          %v761 = vunpack.c.l.b16 %v729
          %v762 = vunpack.c.l.b16 %v730
          %v763 = vunpack.c.l.b16 %v731
          %v764 = vpack.c.b16 %v749, %v748
          %v765 = vpack.c.b16 %v751, %v750
          %v766 = vpack.c.b16 %v753, %v752
          %v767 = vpack.c.b16 %v755, %v754
          %v768 = vpack.c.b16 %v757, %v756
          %v769 = vpack.c.b16 %v759, %v758
          %v770 = vpack.c.b16 %v761, %v760
          %v771 = vpack.c.b16 %v763, %v762
          %780 = vmatprep.subr.bf16.mxu0 0
          %781 = vmatpush1.bf16.msra.mxu0 %v764
          %782 = vmatprep.subr.bf16.mxu0 0
          %783 = vmatpush1.bf16.msra.mxu0 %v765
          %784 = vmatprep.subr.bf16.mxu0 0
          %785 = vmatpush1.bf16.msra.mxu0 %v766
          %786 = vmatprep.subr.bf16.mxu0 0
          %787 = vmatpush1.bf16.msra.mxu0 %v767
          %788 = vmatprep.subr.bf16.mxu0 0
          %789 = vmatpush1.bf16.msra.mxu0 %v768
          %790 = vmatprep.subr.bf16.mxu0 0
          %791 = vmatpush1.bf16.msra.mxu0 %v769
          %792 = vmatprep.subr.bf16.mxu0 0
          %793 = vmatpush1.bf16.msra.mxu0 %v770
          %794 = vmatprep.subr.bf16.mxu0 0
          %795 = vmatpush1.bf16.msra.mxu0 %v771
          %796 = vmatprep.subr.bf16.mxu0 0
          %797 = vmatpush1.bf16.msra.mxu0 0
          %798 = vmatprep.subr.bf16.mxu0 0
          %799 = vmatpush1.bf16.msra.mxu0 0
          %800 = vmatprep.subr.bf16.mxu0 0
          %801 = vmatpush1.bf16.msra.mxu0 0
          %802 = vmatprep.subr.bf16.mxu0 0
          %803 = vmatpush1.bf16.msra.mxu0 0
          %804 = vmatprep.subr.bf16.mxu0 0
          %805 = vmatpush1.bf16.msra.mxu0 0
          %806 = vmatprep.subr.bf16.mxu0 0
          %807 = vmatpush1.bf16.msra.mxu0 0
          %808 = vmatprep.subr.bf16.mxu0 0
          %809 = vmatpush1.bf16.msra.mxu0 0
          %810 = vmatprep.subr.bf16.mxu0 0
          %811 = vmatpush1.bf16.msra.mxu0 0
          %812 = vmatprep.mubr.bf16.mxu0 0
          %813 = vmatmul.mubr.bf16.gmra.mrb[0].mxu0 %v715
          %v814 = vpop.f32.mrb[0].mxu0
          %v815 = vadd.f32 0.0, %v814
          %v816 = vpop.f32.mrb[0].mxu0
          %v817 = vpop.f32.mrb[0].mxu0
          %v818 = vpop.f32.mrb[0].mxu0
          %819 = vdwg.mxu0
          %v820 = vadd.f32 %v714, %v815
          %821 = vst [vmem:[#allocation6] sm:$0xff] %v820
          %p822 = scmp.eq.s32.totalorder %s33, 1
          // Predicated region
          $region73: #{tpu_custom_call.1} parent=67 // pred_check
            %p823 = pneg %p822
          $region74: #{tpu_custom_call.1} parent=67 // pred_check_branch
            %825 = sbr.rel (%p823) target = $region76
          $region75: #{tpu_custom_call.1} parent=67 // pred_region
            %v826 = vld [vmem:[#allocation6] sm:$0xff]
            %v827 = vld [vmem:[#allocation5] sm:$0xff]
            %v828 = vld [vmem:[%s355] sm:$0xf]
            %v829 = vunpack.c.l.bf16 %v828
            %831 = vset.pattern.permute.xlu0 0
            %832 = vperm.xlu0 %831, %v827
            %v833 = vpop.permute.xlu0 %832
            %v835 = vmul.f32 %v833, %v829
            %v836 = vmul.f32 %v826, %v835
            %v837 = vld [vmem:[%s5] sm:$0x3]
            %vm838 = vcmask 64512
            %v840 = vsel %vm838, %v837, 0
            %842 = vmatprep.subr.mxu0 0.0
            %843 = vmatpush1.msra.mxu0 %v836
            %844 = vmatprep.subr.mxu0 0.0
            %845 = vmatpush1.msra.mxu0 0.0
            %846 = vmatprep.subr.mxu0 0.0
            %847 = vmatpush1.msra.mxu0 0.0
            %848 = vmatprep.subr.mxu0 0.0
            %849 = vmatpush1.msra.mxu0 0.0
            %850 = vmatprep.subr.mxu0 0.0
            %851 = vmatpush1.msra.mxu0 0.0
            %852 = vmatprep.subr.mxu0 0.0
            %853 = vmatpush1.msra.mxu0 0.0
            %854 = vmatprep.subr.mxu0 0.0
            %855 = vmatpush1.msra.mxu0 0.0
            %856 = vmatprep.subr.mxu0 0.0
            %857 = vmatpush1.msra.mxu0 0.0
            %858 = vmatprep.subr.mxu0 0.0
            %859 = vmatpush1.msra.mxu0 0.0
            %860 = vmatprep.subr.mxu0 0.0
            %861 = vmatpush1.msra.mxu0 0.0
            %862 = vmatprep.subr.mxu0 0.0
            %863 = vmatpush1.msra.mxu0 0.0
            %864 = vmatprep.subr.mxu0 0.0
            %865 = vmatpush1.msra.mxu0 0.0
            %866 = vmatprep.subr.mxu0 0.0
            %867 = vmatpush1.msra.mxu0 0.0
            %868 = vmatprep.subr.mxu0 0.0
            %869 = vmatpush1.msra.mxu0 0.0
            %870 = vmatprep.subr.mxu0 0.0
            %871 = vmatpush1.msra.mxu0 0.0
            %872 = vmatprep.subr.mxu0 0.0
            %873 = vmatpush1.msra.mxu0 0.0
            %874 = vmatprep.subr.mxu0 0.0
            %875 = vmatpush1.msra.mxu0 0.0
            %876 = vmatprep.subr.mxu0 0.0
            %877 = vmatpush1.msra.mxu0 0.0
            %878 = vmatprep.subr.mxu0 0.0
            %879 = vmatpush1.msra.mxu0 0.0
            %880 = vmatprep.subr.mxu0 0.0
            %881 = vmatpush1.msra.mxu0 0.0
            %882 = vmatprep.subr.mxu0 0.0
            %883 = vmatpush1.msra.mxu0 0.0
            %884 = vmatprep.subr.mxu0 0.0
            %885 = vmatpush1.msra.mxu0 0.0
            %886 = vmatprep.subr.mxu0 0.0
            %887 = vmatpush1.msra.mxu0 0.0
            %888 = vmatprep.subr.mxu0 0.0
            %889 = vmatpush1.msra.mxu0 0.0
            %890 = vmatprep.subr.mxu0 0.0
            %891 = vmatpush1.msra.mxu0 0.0
            %892 = vmatprep.subr.mxu0 0.0
            %893 = vmatpush1.msra.mxu0 0.0
            %894 = vmatprep.subr.mxu0 0.0
            %895 = vmatpush1.msra.mxu0 0.0
            %896 = vmatprep.subr.mxu0 0.0
            %897 = vmatpush1.msra.mxu0 0.0
            %898 = vmatprep.subr.mxu0 0.0
            %899 = vmatpush1.msra.mxu0 0.0
            %900 = vmatprep.subr.mxu0 0.0
            %901 = vmatpush1.msra.mxu0 0.0
            %902 = vmatprep.subr.mxu0 0.0
            %903 = vmatpush1.msra.mxu0 0.0
            %904 = vmatprep.subr.mxu0 0.0
            %905 = vmatpush1.msra.mxu0 0.0
            %906 = vmatprep.mubr.f32.mxu0 0.0
            %907 = vmatmul.mubr.f32.gmra.mrb[0].mxu0 %v840
            %v908 = vpop.f32.mrb[0].mxu0
            %v909 = vadd.f32 0.0, %v908
            %v910 = vpop.f32.mrb[0].mxu0
            %911 = vdwg.mxu0
            %912 = vst [vmem:[%s349] sm:$0x3] %v909
          $region76: #{tpu_custom_call.1} parent=67 // pred_fallthru
            _
        $region68: #{tpu_custom_call.1} parent=43 // pred_fallthru
          _
        %s913 = sand.u32 %s200, 1
        %s914 = scalar_lea.sflag [#allocation9], %s913
        %s915 = sand.u32 %s200, 1
        %s916 = smul.addr %s915, 2
        %s917 = scalar_lea.vmem [#allocation12], %s916
        // Predicated region
        $region77: #{tpu_custom_call.1} parent=43 // pred_check
          %p918 = pneg %p210
        $region78: #{tpu_custom_call.1} parent=43 // pred_check_branch
          %920 = sbr.rel (%p918) target = $region80
        $region79: #{tpu_custom_call.1} parent=43 // pred_region
          %s922 = ssub.s32 32, 32
          %923 = vsyncadd %s914, %s922
          %s924 = smul.addr %s31, 32
          %s925 = scalar_lea.hbm %s6, %s924
          %s927 = sshll.u32 %s917, 4
          %s928 = int_to_ptr.vmem [resolvable:$true] %s927
          %930 = dma.vmem_to_hbm [thread:$0]  %s928, 32, %s925, %s914
        $region80: #{tpu_custom_call.1} parent=43 // pred_fallthru
          _
      $region44: #{tpu_custom_call.1} parent=5 // pred_fallthru
        _
      %p931 = scmp.le.s32.totalorder 2, %s21
      // Predicated region
      $region81: #{tpu_custom_call.1} parent=5 // pred_check
        %p932 = pneg %p931
      $region82: #{tpu_custom_call.1} parent=5 // pred_check_branch
        %934 = sbr.rel (%p932) target = $region84
      $region83: #{tpu_custom_call.1} parent=5 // pred_region
        %s935 = ssub.s32 %s21, 2
        // Predicated region
        $region85: #{tpu_custom_call.1} parent=83 // pred_check
          %p936 = pneg %p216
        $region86: #{tpu_custom_call.1} parent=83 // pred_check_branch
          %938 = sbr.rel (%p936) target = $region88
        $region87: #{tpu_custom_call.1} parent=83 // pred_region
          %s939 = sand.u32 %s201, 1
          %s940 = scalar_lea.sflag [#allocation9], %s939
          %s941 = sand.u32 %s201, 1
          %s942 = smul.addr %s941, 2
          %s943 = scalar_lea.vmem [#allocation12], %s942
          %944 = dma.done %s940, 32
        $region88: #{tpu_custom_call.1} parent=83 // pred_fallthru
          _
      $region84: #{tpu_custom_call.1} parent=5 // pred_fallthru
        _
    $region6: #{tpu_custom_call.1} parent=1 // loop_footer
      %s25 = sadd.s32 1, %s21
    $region7: #{tpu_custom_call.1} parent=1 // loop_footer_branch
      %20 = sbr.rel target = $region3
    $region8: #{tpu_custom_call.1} parent=1 // loop_exit
      _
    %945 = vsyncpa [#allocation8], 1
    %s946 = scalar_lea.sflag [#allocation8], 1
    %947 = vsyncpa %s946, 1
    %948 = vsyncpa [#allocation11], 1
    %s949 = scalar_lea.sflag [#allocation11], 1
    %950 = vsyncpa %s949, 1
    %951 = vsyncpa [#allocation9], 1
    %s952 = scalar_lea.sflag [#allocation9], 1
    %953 = vsyncpa %s952, 1

</llo_original>
